<compile_context>
chip_gen: v6e
topology: v6e:2x2x1
jax: 0.10.0
libtpu: 0.0.40
codegen_flags: <defaults>
</compile_context>

<pallas_src>
import jax
import jax.numpy as jnp
from jax.experimental import pallas as pl
from jax.experimental.pallas import tpu as pltpu


LANES = 128          # vreg lane width; all feature dims are padded to this
NUM_LAYERS = 4


# ----------------------------- Pallas kernel -------------------------------

def phi_net_kernel(x_ref, w_ref, o_ref):
    """Whole MLP for one batch tile, entirely in VMEM.

    x_ref : (tile_b, 128)   activations, lane 127 == 1.0 (homogeneous coord)
    w_ref : (4, 128, 128)   padded weights (bias folded into row 127)
    o_ref : (tile_b, 128)   lanes [0, dim_a) hold [fc4(x), 1.0]
    """
    h = x_ref[...]
    h = jnp.maximum(jnp.dot(h, w_ref[0], preferred_element_type=jnp.float32), 0.0)
    h = jnp.maximum(jnp.dot(h, w_ref[1], preferred_element_type=jnp.float32), 0.0)
    h = jnp.maximum(jnp.dot(h, w_ref[2], preferred_element_type=jnp.float32), 0.0)
    o_ref[...] = jnp.dot(h, w_ref[3], preferred_element_type=jnp.float32)


# ------------------------------ Host wrapper --------------------------------

def _round_up(n, m):
    return ((n + m - 1) // m) * m


def _pack_weights(params, dim_a):
    """Pad each (in,out) weight + bias into a 128x128 homogeneous-coord block."""
    def pad(w, b, ones_col):
        in_dim, out_dim = w.shape
        assert in_dim < LANES and out_dim < LANES and ones_col < LANES
        wp = jnp.zeros((LANES, LANES), jnp.float32)
        wp = wp.at[:in_dim, :out_dim].set(w.astype(jnp.float32))
        # bias lives in the row matching the input's ones lane (127)
        wp = wp.at[LANES - 1, :out_dim].set(b.reshape(-1).astype(jnp.float32))
        # propagate the constant-1 lane to `ones_col` of the output
        wp = wp.at[LANES - 1, ones_col].set(1.0)
        return wp

    (w1, b1), (w2, b2), (w3, b3), (w4, b4) = params
    return jnp.stack([
        pad(w1, b1, LANES - 1),
        pad(w2, b2, LANES - 1),
        pad(w3, b3, LANES - 1),
        pad(w4, b4, dim_a - 1),   # ones lane -> output column dim_a-1 (the concat)
    ])


def phi_net_forward(x, params, *, dim_a, tile_b=None):
    """Run Phi_Net forward.  x: (B, dim_x) or (dim_x,) float32."""
    single = (x.ndim == 1)
    if single:
        x = x[None, :]
    x = x.astype(jnp.float32)
    B, dim_x = x.shape
    assert dim_x < LANES and 1 <= dim_a <= LANES

    # Batch tiling: one big block for small batches (no pipeline overhead),
    # 512-row MXU-sized tiles (multiple of 128/256) for large batches.
    if tile_b is None:
        tile_b = _round_up(B, 8) if B <= 512 else 512
    B_pad = _round_up(B, tile_b)

    # Pad x to 128 lanes and install the homogeneous-coordinate ones lane.
    xp = jnp.zeros((B_pad, LANES), jnp.float32)
    xp = xp.at[:B, :dim_x].set(x)
    xp = xp.at[:, LANES - 1].set(1.0)

    wp = _pack_weights(params, dim_a)

    grid = (B_pad // tile_b,)
    flops = 2 * B_pad * LANES * LANES * NUM_LAYERS
    bytes_accessed = (xp.size + wp.size + B_pad * LANES) * 4

    out = pl.pallas_call(
        phi_net_kernel,
        out_shape=jax.ShapeDtypeStruct((B_pad, LANES), jnp.float32),
        grid_spec=pltpu.PrefetchScalarGridSpec(
            num_scalar_prefetch=0,
            grid=grid,
            in_specs=[
                pl.BlockSpec((tile_b, LANES), lambda i: (i, 0)),              # x tile
                pl.BlockSpec((NUM_LAYERS, LANES, LANES), lambda i: (0, 0, 0)),  # weights (resident)
            ],
            out_specs=pl.BlockSpec((tile_b, LANES), lambda i: (i, 0)),
        ),
        compiler_params=pltpu.CompilerParams(
            dimension_semantics=("parallel",)),
        cost_estimate=pl.CostEstimate(
            flops=flops, transcendentals=0, bytes_accessed=bytes_accessed),
    )(xp, wp)

    out = out[:B, :dim_a]
    if single:
        out = out[0]
    return out


# --------------------------- Parameter construction -------------------------

def init_phi_net_params(key, dim_x, dim_a):
    """Deterministic init mimicking nn.Linear defaults: U(-1/sqrt(fan_in), +)."""
    dims = [(dim_x, 50), (50, 60), (60, 50), (50, dim_a - 1)]
    params = []
    for (fan_in, fan_out) in dims:
        key, kw, kb = jax.random.split(key, 3)
        bound = 1.0 / jnp.sqrt(jnp.float32(fan_in))
        # stored transposed: (in, out), so forward is x @ W + b
        w = jax.random.uniform(kw, (fan_in, fan_out), jnp.float32, -bound, bound)
        b = jax.random.uniform(kb, (1, fan_out), jnp.float32, -bound, bound)
        params.append((w, b))
    return params


def phi_net_reference(x, params, dim_a):
    """Pure-JAX reference of the PyTorch forward (for correctness check)."""
    (w1, b1), (w2, b2), (w3, b3), (w4, b4) = params
    h = jnp.maximum(x @ w1 + b1, 0.0)
    h = jnp.maximum(h @ w2 + b2, 0.0)
    h = jnp.maximum(h @ w3 + b3, 0.0)
    h = h @ w4 + b4
    ones = jnp.ones(h.shape[:-1] + (1,), h.dtype)
    return jnp.concatenate([h, ones], axis=-1)


# ----------------------------------- main ------------------------------------

if __name__ == "__main__":
    options = {"dim_x": 11, "dim_a": 4}   # as in the neural-wind setup

    key = jax.random.PRNGKey(0)
    key, kx = jax.random.split(key)
    params = init_phi_net_params(key, options["dim_x"], options["dim_a"])

    # --- small batched path (single tile, grid=(1,)) ---
    B = 16
    x = jax.random.normal(kx, (B, options["dim_x"]), jnp.float32)
    out = jax.block_until_ready(phi_net_forward(x, params, dim_a=options["dim_a"]))
    ref = phi_net_reference(x, params, options["dim_a"])
    assert out.shape == (B, options["dim_a"]), out.shape
    assert jnp.allclose(out, ref, atol=1e-4, rtol=1e-4), "mismatch vs reference"
    assert jnp.all(out[:, -1] == 1.0)                      # exact concat-ones column

    # --- larger batch: exercises multi-tile grid + batch padding ---
    B2 = 700
    key, kx2 = jax.random.split(key)
    x2 = jax.random.normal(kx2, (B2, options["dim_x"]), jnp.float32)
    out2 = jax.block_until_ready(phi_net_forward(x2, params, dim_a=options["dim_a"]))
    ref2 = phi_net_reference(x2, params, options["dim_a"])
    assert out2.shape == (B2, options["dim_a"]), out2.shape
    assert jnp.allclose(out2, ref2, atol=1e-4, rtol=1e-4), "mismatch vs reference (B2)"
    assert jnp.all(out2[:, -1] == 1.0)

    # --- single-sample (1-D) path, mirroring the torch len(x.shape)==1 branch ---
    out1 = jax.block_until_ready(phi_net_forward(x[0], params, dim_a=options["dim_a"]))
    assert out1.shape == (options["dim_a"],), out1.shape
    assert jnp.allclose(out1, ref[0], atol=1e-4, rtol=1e-4), "mismatch vs reference (1-D)"

    print("KERNEL_OK")
</pallas_src>

<mosaic_0001>
module attributes {stable_mosaic.version = 11 : i64} {
  func.func @phi_net_kernel(%arg0: i32, %arg1: memref<16x128xf32, #tpu.memory_space<vmem>>, %arg2: memref<4x128x128xf32, #tpu.memory_space<vmem>>, %arg3: memref<16x128xf32, #tpu.memory_space<vmem>>) attributes {dimension_semantics = [#tpu.dimension_semantics<parallel>], iteration_bounds = array<i64: 1>, scalar_prefetch = 0 : i64, scratch_operands = 0 : i64, tpu.core_type = #tpu.core_type<tc>, window_params = [{transform_indices = @transform_0, window_bounds = array<i64: 16, 128>}, {pipeline_mode = #tpu.pipeline_mode<synchronous>, transform_indices = @transform_1, window_bounds = array<i64: 4, 128, 128>}, {transform_indices = @transform_2, window_bounds = array<i64: 16, 128>}]} {
    %c0 = arith.constant 0 : index
    %c0_0 = arith.constant 0 : index
    %0 = vector.load %arg1[%c0, %c0_0] : memref<16x128xf32, #tpu.memory_space<vmem>>, vector<16x128xf32>
    %c0_1 = arith.constant 0 : index
    %c0_2 = arith.constant 0 : index
    %c0_3 = arith.constant 0 : index
    %1 = vector.load %arg2[%c0_1, %c0_2, %c0_3] : memref<4x128x128xf32, #tpu.memory_space<vmem>>, vector<1x128x128xf32>
    %2 = vector.shape_cast %1 : vector<1x128x128xf32> to vector<128x128xf32>
    %cst = arith.constant dense<0.000000e+00> : vector<16x128xf32>
    %3 = tpu.matmul %0, %2, %cst {dimension_numbers = #tpu.dot_dimension_numbers<[1], [0], [0], [1], [0, 0, 1, 1], [], []>} : vector<16x128xf32>, vector<128x128xf32>, vector<16x128xf32> -> vector<16x128xf32>
    %cst_4 = arith.constant 0.000000e+00 : f32
    %4 = vector.broadcast %cst_4 : f32 to vector<16x128xf32>
    %5 = arith.maximumf %3, %4 : vector<16x128xf32>
    %c1 = arith.constant 1 : index
    %c0_5 = arith.constant 0 : index
    %c0_6 = arith.constant 0 : index
    %6 = vector.load %arg2[%c1, %c0_5, %c0_6] : memref<4x128x128xf32, #tpu.memory_space<vmem>>, vector<1x128x128xf32>
    %7 = vector.shape_cast %6 : vector<1x128x128xf32> to vector<128x128xf32>
    %cst_7 = arith.constant dense<0.000000e+00> : vector<16x128xf32>
    %8 = tpu.matmul %5, %7, %cst_7 {dimension_numbers = #tpu.dot_dimension_numbers<[1], [0], [0], [1], [0, 0, 1, 1], [], []>} : vector<16x128xf32>, vector<128x128xf32>, vector<16x128xf32> -> vector<16x128xf32>
    %cst_8 = arith.constant 0.000000e+00 : f32
    %9 = vector.broadcast %cst_8 : f32 to vector<16x128xf32>
    %10 = arith.maximumf %8, %9 : vector<16x128xf32>
    %c2 = arith.constant 2 : index
    %c0_9 = arith.constant 0 : index
    %c0_10 = arith.constant 0 : index
    %11 = vector.load %arg2[%c2, %c0_9, %c0_10] : memref<4x128x128xf32, #tpu.memory_space<vmem>>, vector<1x128x128xf32>
    %12 = vector.shape_cast %11 : vector<1x128x128xf32> to vector<128x128xf32>
    %cst_11 = arith.constant dense<0.000000e+00> : vector<16x128xf32>
    %13 = tpu.matmul %10, %12, %cst_11 {dimension_numbers = #tpu.dot_dimension_numbers<[1], [0], [0], [1], [0, 0, 1, 1], [], []>} : vector<16x128xf32>, vector<128x128xf32>, vector<16x128xf32> -> vector<16x128xf32>
    %cst_12 = arith.constant 0.000000e+00 : f32
    %14 = vector.broadcast %cst_12 : f32 to vector<16x128xf32>
    %15 = arith.maximumf %13, %14 : vector<16x128xf32>
    %c3 = arith.constant 3 : index
    %c0_13 = arith.constant 0 : index
    %c0_14 = arith.constant 0 : index
    %16 = vector.load %arg2[%c3, %c0_13, %c0_14] : memref<4x128x128xf32, #tpu.memory_space<vmem>>, vector<1x128x128xf32>
    %17 = vector.shape_cast %16 : vector<1x128x128xf32> to vector<128x128xf32>
    %cst_15 = arith.constant dense<0.000000e+00> : vector<16x128xf32>
    %18 = tpu.matmul %15, %17, %cst_15 {dimension_numbers = #tpu.dot_dimension_numbers<[1], [0], [0], [1], [0, 0, 1, 1], [], []>} : vector<16x128xf32>, vector<128x128xf32>, vector<16x128xf32> -> vector<16x128xf32>
    %c0_16 = arith.constant 0 : index
    %c0_17 = arith.constant 0 : index
    %19 = vector.load %arg3[%c0_16, %c0_17] : memref<16x128xf32, #tpu.memory_space<vmem>>, vector<16x128xf32>
    tpu.vector_store %arg3[%c0_16, %c0_17], %18 {strides = array<i32>} : memref<16x128xf32, #tpu.memory_space<vmem>>, vector<16x128xf32>,
    return
  }
  func.func @transform_0(%arg0: i32) -> (i32, i32) {
    %c0_i32 = arith.constant 0 : i32
    %c0_i32_0 = arith.constant 0 : i32
    return %arg0, %c0_i32 : i32, i32
  }
  func.func @transform_1(%arg0: i32) -> (i32, i32, i32) {
    %c0_i32 = arith.constant 0 : i32
    %c0_i32_0 = arith.constant 0 : i32
    %c0_i32_1 = arith.constant 0 : i32
    %c0_i32_2 = arith.constant 0 : i32
    return %c0_i32, %c0_i32_0, %c0_i32_1 : i32, i32, i32
  }
  func.func @transform_2(%arg0: i32) -> (i32, i32) {
    %c0_i32 = arith.constant 0 : i32
    %c0_i32_0 = arith.constant 0 : i32
    return %arg0, %c0_i32 : i32, i32
  }
}

</mosaic_0001>

<llo_original>
// kernel: tpu_custom_call.1
$region0: #{tpu_custom_call.1}
  #allocation0 [shape = 'u32[]', space=smem, size = 0x4, offset = 0x4, fixed_abs, tag = 'smem constant byte address 0x4 - core index']
  #allocation1 [shape = 'u32[144,128]{1,0:T(1,128)}', space=vmem, size = 0x12000, scoped, tag = 'internal scratch']
  %s0 = inlined_call_operand.hbm [shape: f32[16,128], index: 0, kind: input, shape index: {}]
  %s1 = inlined_call_operand.hbm [shape: f32[4,128,128], index: 1, kind: input, shape index: {}]
  %s2 = inlined_call_operand.hbm [shape: f32[16,128], index: 2, kind: output, shape index: {}]
  %s3 = sld [smem:[#allocation0]]
  $region26: #{tpu_custom_call.1} parent=0
    _
  %s5 = ssub.s32 1, %s3
  %s6 = scalar_select 0, %s5, %s3
  $region1: #{tpu_custom_call.1} parent=0
    #allocation2 [shape = 'u8[8192]{0}', space=vmem, size = 0x2000, scoped, tag = 'input window, operand 0, single buffered']
    #allocation3 [shape = 's32[1]{0}', space=sflag, size = 0x4, scoped, tag = 'scoped memory for tpu_custom_call.1']
    #allocation4 [shape = 's32[1]{0}', space=sflag, size = 0x4, scoped, tag = 'scoped memory for tpu_custom_call.1']
    #allocation5 [shape = 'u8[262144]{0}', space=vmem, size = 0x40000, scoped, tag = 'input window, operand 1, single buffered']
    #allocation6 [shape = 's32[1]{0}', space=sflag, size = 0x4, scoped, tag = 'scoped memory for tpu_custom_call.1']
    #allocation7 [shape = 'u8[8192]{0}', space=vmem, size = 0x2000, scoped, tag = 'output window, operand 0, single buffered']
    %7 = vsyncpa [#allocation3], 0
    %8 = vsyncpa [#allocation6], 0
    %9 = vsyncpa [#allocation4], 0
    // Predicated region
    $region2: #{tpu_custom_call.1} parent=1 // pred_check
      _
    $region3: #{tpu_custom_call.1} parent=1 // pred_check_branch
      %11 = sbr.rel (0) target = $region5
    $region4: #{tpu_custom_call.1} parent=1 // pred_region
      %s13 = ssub.s32 256, 256
      %14 = vsyncadd [#allocation3], %s13
      %s15 = sshll.u32 [#allocation2], 4
      %s16 = int_to_ptr.vmem [resolvable:$true] %s15
      %21 = dma.hbm_to_vmem [thread:$0]  %s0, 256, %s16, [#allocation3], 128, 128, 8
    $region5: #{tpu_custom_call.1} parent=1 // pred_fallthru
      _
    // Predicated region
    $region6: #{tpu_custom_call.1} parent=1 // pred_check
      _
    $region7: #{tpu_custom_call.1} parent=1 // pred_check_branch
      %23 = sbr.rel (0) target = $region9
    $region8: #{tpu_custom_call.1} parent=1 // pred_region
      %s25 = ssub.s32 8192, 8192
      %26 = vsyncadd [#allocation6], %s25
      %s27 = sshll.u32 [#allocation5], 4
      %s28 = int_to_ptr.vmem [resolvable:$true] %s27
      %33 = dma.hbm_to_vmem [thread:$0]  %s1, 8192, %s28, [#allocation6], 128, 128, 8
    $region9: #{tpu_custom_call.1} parent=1 // pred_fallthru
      _
    // Predicated region
    $region10: #{tpu_custom_call.1} parent=1 // pred_check
      _
    $region11: #{tpu_custom_call.1} parent=1 // pred_check_branch
      %35 = sbr.rel (0) target = $region13
    $region12: #{tpu_custom_call.1} parent=1 // pred_region
      %36 = dma.done [#allocation3], 256
    $region13: #{tpu_custom_call.1} parent=1 // pred_fallthru
      _
    // Predicated region
    $region14: #{tpu_custom_call.1} parent=1 // pred_check
      _
    $region15: #{tpu_custom_call.1} parent=1 // pred_check_branch
      %38 = sbr.rel (0) target = $region17
    $region16: #{tpu_custom_call.1} parent=1 // pred_region
      %39 = dma.done [#allocation6], 8192
    $region17: #{tpu_custom_call.1} parent=1 // pred_fallthru
      _
    %v40 = vld [vmem:[#allocation2] sm:$0xff]
    %v41 = vld [vmem:[#allocation2 + $0x8] sm:$0xff]
    %v42 = vld [vmem:[#allocation5] sm:$0xff]
    %v43 = vld [vmem:[#allocation5 + $0x8] sm:$0xff]
    %v44 = vld [vmem:[#allocation5 + $0x10] sm:$0xff]
    %v45 = vld [vmem:[#allocation5 + $0x18] sm:$0xff]
    %v46 = vld [vmem:[#allocation5 + $0x20] sm:$0xff]
    %v47 = vld [vmem:[#allocation5 + $0x28] sm:$0xff]
    %v48 = vld [vmem:[#allocation5 + $0x30] sm:$0xff]
    %v49 = vld [vmem:[#allocation5 + $0x38] sm:$0xff]
    %v50 = vld [vmem:[#allocation5 + $0x40] sm:$0xff]
    %v51 = vld [vmem:[#allocation5 + $0x48] sm:$0xff]
    %v52 = vld [vmem:[#allocation5 + $0x50] sm:$0xff]
    %v53 = vld [vmem:[#allocation5 + $0x58] sm:$0xff]
    %v54 = vld [vmem:[#allocation5 + $0x60] sm:$0xff]
    %v55 = vld [vmem:[#allocation5 + $0x68] sm:$0xff]
    %v56 = vld [vmem:[#allocation5 + $0x70] sm:$0xff]
    %v57 = vld [vmem:[#allocation5 + $0x78] sm:$0xff]
    %58 = vmatprep.subr.mxu0 0.0
    %59 = vmatpush1.msra.mxu0 %v57
    %60 = vmatprep.subr.mxu0 0.0
    %61 = vmatpush1.msra.mxu0 %v56
    %62 = vmatprep.subr.mxu0 0.0
    %63 = vmatpush1.msra.mxu0 %v55
    %64 = vmatprep.subr.mxu0 0.0
    %65 = vmatpush1.msra.mxu0 %v54
    %66 = vmatprep.subr.mxu0 0.0
    %67 = vmatpush1.msra.mxu0 %v53
    %68 = vmatprep.subr.mxu0 0.0
    %69 = vmatpush1.msra.mxu0 %v52
    %70 = vmatprep.subr.mxu0 0.0
    %71 = vmatpush1.msra.mxu0 %v51
    %72 = vmatprep.subr.mxu0 0.0
    %73 = vmatpush1.msra.mxu0 %v50
    %74 = vmatprep.subr.mxu0 0.0
    %75 = vmatpush1.msra.mxu0 %v49
    %76 = vmatprep.subr.mxu0 0.0
    %77 = vmatpush1.msra.mxu0 %v48
    %78 = vmatprep.subr.mxu0 0.0
    %79 = vmatpush1.msra.mxu0 %v47
    %80 = vmatprep.subr.mxu0 0.0
    %81 = vmatpush1.msra.mxu0 %v46
    %82 = vmatprep.subr.mxu0 0.0
    %83 = vmatpush1.msra.mxu0 %v45
    %84 = vmatprep.subr.mxu0 0.0
    %85 = vmatpush1.msra.mxu0 %v44
    %86 = vmatprep.subr.mxu0 0.0
    %87 = vmatpush1.msra.mxu0 %v43
    %88 = vmatprep.subr.mxu0 0.0
    %89 = vmatpush1.msra.mxu0 %v42
    %90 = vmatprep.subr.mxu0 0.0
    %91 = vmatpush2.msra.mxu0 0.0
    %92 = vmatprep.subr.mxu0 0.0
    %93 = vmatpush2.msra.mxu0 0.0
    %94 = vmatprep.subr.mxu0 0.0
    %95 = vmatpush2.msra.mxu0 0.0
    %96 = vmatprep.subr.mxu0 0.0
    %97 = vmatpush2.msra.mxu0 0.0
    %98 = vmatprep.subr.mxu0 0.0
    %99 = vmatpush2.msra.mxu0 0.0
    %100 = vmatprep.subr.mxu0 0.0
    %101 = vmatpush2.msra.mxu0 0.0
    %102 = vmatprep.subr.mxu0 0.0
    %103 = vmatpush2.msra.mxu0 0.0
    %104 = vmatprep.subr.mxu0 0.0
    %105 = vmatpush2.msra.mxu0 0.0
    %106 = vmatprep.subr.mxu0 0.0
    %107 = vmatpush2.msra.mxu0 0.0
    %108 = vmatprep.subr.mxu0 0.0
    %109 = vmatpush2.msra.mxu0 0.0
    %110 = vmatprep.subr.mxu0 0.0
    %111 = vmatpush2.msra.mxu0 0.0
    %112 = vmatprep.subr.mxu0 0.0
    %113 = vmatpush2.msra.mxu0 0.0
    %114 = vmatprep.subr.mxu0 0.0
    %115 = vmatpush2.msra.mxu0 0.0
    %116 = vmatprep.subr.mxu0 0.0
    %117 = vmatpush2.msra.mxu0 0.0
    %118 = vmatprep.subr.mxu0 0.0
    %119 = vmatpush2.msra.mxu0 0.0
    %120 = vmatprep.subr.mxu0 0.0
    %121 = vmatpush2.msra.mxu0 0.0
    %122 = vmatprep.mubr.f32.mxu0 0.0
    %123 = vmatmul.mubr.f32.gmra.mxu0 %v40
    %v124 = vpop.f32.mrf.mxu0
    %v125 = vadd.f32 0.0, %v124
    %v126 = vpop.f32.mrf.mxu0
    %127 = vmatprep.mubr.f32.mxu0 0.0
    %128 = vmatmul.mubr.f32.gmra.mxu0 %v41
    %v129 = vpop.f32.mrf.mxu0
    %v130 = vadd.f32 0.0, %v129
    %v131 = vpop.f32.mrf.mxu0
    %132 = vdwg.mxu0
    %v133 = vmax.f32 %v125, 0.0
    %v134 = vmax.f32 %v130, 0.0
    %s135 = scalar_lea.vmem [#allocation5], 128
    %v136 = vld [vmem:[%s135] sm:$0xff]
    %v137 = vld [vmem:[%s135 + $0x8] sm:$0xff]
    %v138 = vld [vmem:[%s135 + $0x10] sm:$0xff]
    %v139 = vld [vmem:[%s135 + $0x18] sm:$0xff]
    %v140 = vld [vmem:[%s135 + $0x20] sm:$0xff]
    %v141 = vld [vmem:[%s135 + $0x28] sm:$0xff]
    %v142 = vld [vmem:[%s135 + $0x30] sm:$0xff]
    %v143 = vld [vmem:[%s135 + $0x38] sm:$0xff]
    %v144 = vld [vmem:[%s135 + $0x40] sm:$0xff]
    %v145 = vld [vmem:[%s135 + $0x48] sm:$0xff]
    %v146 = vld [vmem:[%s135 + $0x50] sm:$0xff]
    %v147 = vld [vmem:[%s135 + $0x58] sm:$0xff]
    %v148 = vld [vmem:[%s135 + $0x60] sm:$0xff]
    %v149 = vld [vmem:[%s135 + $0x68] sm:$0xff]
    %v150 = vld [vmem:[%s135 + $0x70] sm:$0xff]
    %v151 = vld [vmem:[%s135 + $0x78] sm:$0xff]
    %152 = vmatprep.subr.mxu0 0.0
    %153 = vmatpush1.msra.mxu0 %v151
    %154 = vmatprep.subr.mxu0 0.0
    %155 = vmatpush1.msra.mxu0 %v150
    %156 = vmatprep.subr.mxu0 0.0
    %157 = vmatpush1.msra.mxu0 %v149
    %158 = vmatprep.subr.mxu0 0.0
    %159 = vmatpush1.msra.mxu0 %v148
    %160 = vmatprep.subr.mxu0 0.0
    %161 = vmatpush1.msra.mxu0 %v147
    %162 = vmatprep.subr.mxu0 0.0
    %163 = vmatpush1.msra.mxu0 %v146
    %164 = vmatprep.subr.mxu0 0.0
    %165 = vmatpush1.msra.mxu0 %v145
    %166 = vmatprep.subr.mxu0 0.0
    %167 = vmatpush1.msra.mxu0 %v144
    %168 = vmatprep.subr.mxu0 0.0
    %169 = vmatpush1.msra.mxu0 %v143
    %170 = vmatprep.subr.mxu0 0.0
    %171 = vmatpush1.msra.mxu0 %v142
    %172 = vmatprep.subr.mxu0 0.0
    %173 = vmatpush1.msra.mxu0 %v141
    %174 = vmatprep.subr.mxu0 0.0
    %175 = vmatpush1.msra.mxu0 %v140
    %176 = vmatprep.subr.mxu0 0.0
    %177 = vmatpush1.msra.mxu0 %v139
    %178 = vmatprep.subr.mxu0 0.0
    %179 = vmatpush1.msra.mxu0 %v138
    %180 = vmatprep.subr.mxu0 0.0
    %181 = vmatpush1.msra.mxu0 %v137
    %182 = vmatprep.subr.mxu0 0.0
    %183 = vmatpush1.msra.mxu0 %v136
    %184 = vmatprep.subr.mxu0 0.0
    %185 = vmatpush2.msra.mxu0 0.0
    %186 = vmatprep.subr.mxu0 0.0
    %187 = vmatpush2.msra.mxu0 0.0
    %188 = vmatprep.subr.mxu0 0.0
    %189 = vmatpush2.msra.mxu0 0.0
    %190 = vmatprep.subr.mxu0 0.0
    %191 = vmatpush2.msra.mxu0 0.0
    %192 = vmatprep.subr.mxu0 0.0
    %193 = vmatpush2.msra.mxu0 0.0
    %194 = vmatprep.subr.mxu0 0.0
    %195 = vmatpush2.msra.mxu0 0.0
    %196 = vmatprep.subr.mxu0 0.0
    %197 = vmatpush2.msra.mxu0 0.0
    %198 = vmatprep.subr.mxu0 0.0
    %199 = vmatpush2.msra.mxu0 0.0
    %200 = vmatprep.subr.mxu0 0.0
    %201 = vmatpush2.msra.mxu0 0.0
    %202 = vmatprep.subr.mxu0 0.0
    %203 = vmatpush2.msra.mxu0 0.0
    %204 = vmatprep.subr.mxu0 0.0
    %205 = vmatpush2.msra.mxu0 0.0
    %206 = vmatprep.subr.mxu0 0.0
    %207 = vmatpush2.msra.mxu0 0.0
    %208 = vmatprep.subr.mxu0 0.0
    %209 = vmatpush2.msra.mxu0 0.0
    %210 = vmatprep.subr.mxu0 0.0
    %211 = vmatpush2.msra.mxu0 0.0
    %212 = vmatprep.subr.mxu0 0.0
    %213 = vmatpush2.msra.mxu0 0.0
    %214 = vmatprep.subr.mxu0 0.0
    %215 = vmatpush2.msra.mxu0 0.0
    %216 = vmatprep.mubr.f32.mxu0 0.0
    %217 = vmatmul.mubr.f32.gmra.mxu0 %v133
    %v218 = vpop.f32.mrf.mxu0
    %v219 = vadd.f32 0.0, %v218
    %v220 = vpop.f32.mrf.mxu0
    %221 = vmatprep.mubr.f32.mxu0 0.0
    %222 = vmatmul.mubr.f32.gmra.mxu0 %v134
    %v223 = vpop.f32.mrf.mxu0
    %v224 = vadd.f32 0.0, %v223
    %v225 = vpop.f32.mrf.mxu0
    %226 = vdwg.mxu0
    %v227 = vmax.f32 %v219, 0.0
    %v228 = vmax.f32 %v224, 0.0
    %s229 = scalar_lea.vmem [#allocation5], 256
    %v230 = vld [vmem:[%s229] sm:$0xff]
    %v231 = vld [vmem:[%s229 + $0x8] sm:$0xff]
    %v232 = vld [vmem:[%s229 + $0x10] sm:$0xff]
    %v233 = vld [vmem:[%s229 + $0x18] sm:$0xff]
    %v234 = vld [vmem:[%s229 + $0x20] sm:$0xff]
    %v235 = vld [vmem:[%s229 + $0x28] sm:$0xff]
    %v236 = vld [vmem:[%s229 + $0x30] sm:$0xff]
    %v237 = vld [vmem:[%s229 + $0x38] sm:$0xff]
    %v238 = vld [vmem:[%s229 + $0x40] sm:$0xff]
    %v239 = vld [vmem:[%s229 + $0x48] sm:$0xff]
    %v240 = vld [vmem:[%s229 + $0x50] sm:$0xff]
    %v241 = vld [vmem:[%s229 + $0x58] sm:$0xff]
    %v242 = vld [vmem:[%s229 + $0x60] sm:$0xff]
    %v243 = vld [vmem:[%s229 + $0x68] sm:$0xff]
    %v244 = vld [vmem:[%s229 + $0x70] sm:$0xff]
    %v245 = vld [vmem:[%s229 + $0x78] sm:$0xff]
    %246 = vmatprep.subr.mxu0 0.0
    %247 = vmatpush1.msra.mxu0 %v245
    %248 = vmatprep.subr.mxu0 0.0
    %249 = vmatpush1.msra.mxu0 %v244
    %250 = vmatprep.subr.mxu0 0.0
    %251 = vmatpush1.msra.mxu0 %v243
    %252 = vmatprep.subr.mxu0 0.0
    %253 = vmatpush1.msra.mxu0 %v242
    %254 = vmatprep.subr.mxu0 0.0
    %255 = vmatpush1.msra.mxu0 %v241
    %256 = vmatprep.subr.mxu0 0.0
    %257 = vmatpush1.msra.mxu0 %v240
    %258 = vmatprep.subr.mxu0 0.0
    %259 = vmatpush1.msra.mxu0 %v239
    %260 = vmatprep.subr.mxu0 0.0
    %261 = vmatpush1.msra.mxu0 %v238
    %262 = vmatprep.subr.mxu0 0.0
    %263 = vmatpush1.msra.mxu0 %v237
    %264 = vmatprep.subr.mxu0 0.0
    %265 = vmatpush1.msra.mxu0 %v236
    %266 = vmatprep.subr.mxu0 0.0
    %267 = vmatpush1.msra.mxu0 %v235
    %268 = vmatprep.subr.mxu0 0.0
    %269 = vmatpush1.msra.mxu0 %v234
    %270 = vmatprep.subr.mxu0 0.0
    %271 = vmatpush1.msra.mxu0 %v233
    %272 = vmatprep.subr.mxu0 0.0
    %273 = vmatpush1.msra.mxu0 %v232
    %274 = vmatprep.subr.mxu0 0.0
    %275 = vmatpush1.msra.mxu0 %v231
    %276 = vmatprep.subr.mxu0 0.0
    %277 = vmatpush1.msra.mxu0 %v230
    %278 = vmatprep.subr.mxu0 0.0
    %279 = vmatpush2.msra.mxu0 0.0
    %280 = vmatprep.subr.mxu0 0.0
    %281 = vmatpush2.msra.mxu0 0.0
    %282 = vmatprep.subr.mxu0 0.0
    %283 = vmatpush2.msra.mxu0 0.0
    %284 = vmatprep.subr.mxu0 0.0
    %285 = vmatpush2.msra.mxu0 0.0
    %286 = vmatprep.subr.mxu0 0.0
    %287 = vmatpush2.msra.mxu0 0.0
    %288 = vmatprep.subr.mxu0 0.0
    %289 = vmatpush2.msra.mxu0 0.0
    %290 = vmatprep.subr.mxu0 0.0
    %291 = vmatpush2.msra.mxu0 0.0
    %292 = vmatprep.subr.mxu0 0.0
    %293 = vmatpush2.msra.mxu0 0.0
    %294 = vmatprep.subr.mxu0 0.0
    %295 = vmatpush2.msra.mxu0 0.0
    %296 = vmatprep.subr.mxu0 0.0
    %297 = vmatpush2.msra.mxu0 0.0
    %298 = vmatprep.subr.mxu0 0.0
    %299 = vmatpush2.msra.mxu0 0.0
    %300 = vmatprep.subr.mxu0 0.0
    %301 = vmatpush2.msra.mxu0 0.0
    %302 = vmatprep.subr.mxu0 0.0
    %303 = vmatpush2.msra.mxu0 0.0
    %304 = vmatprep.subr.mxu0 0.0
    %305 = vmatpush2.msra.mxu0 0.0
    %306 = vmatprep.subr.mxu0 0.0
    %307 = vmatpush2.msra.mxu0 0.0
    %308 = vmatprep.subr.mxu0 0.0
    %309 = vmatpush2.msra.mxu0 0.0
    %310 = vmatprep.mubr.f32.mxu0 0.0
    %311 = vmatmul.mubr.f32.gmra.mxu0 %v227
    %v312 = vpop.f32.mrf.mxu0
    %v313 = vadd.f32 0.0, %v312
    %v314 = vpop.f32.mrf.mxu0
    %315 = vmatprep.mubr.f32.mxu0 0.0
    %316 = vmatmul.mubr.f32.gmra.mxu0 %v228
    %v317 = vpop.f32.mrf.mxu0
    %v318 = vadd.f32 0.0, %v317
    %v319 = vpop.f32.mrf.mxu0
    %320 = vdwg.mxu0
    %v321 = vmax.f32 %v313, 0.0
    %v322 = vmax.f32 %v318, 0.0
    %s323 = scalar_lea.vmem [#allocation5], 384
    %v324 = vld [vmem:[%s323] sm:$0xff]
    %v325 = vld [vmem:[%s323 + $0x8] sm:$0xff]
    %v326 = vld [vmem:[%s323 + $0x10] sm:$0xff]
    %v327 = vld [vmem:[%s323 + $0x18] sm:$0xff]
    %v328 = vld [vmem:[%s323 + $0x20] sm:$0xff]
    %v329 = vld [vmem:[%s323 + $0x28] sm:$0xff]
    %v330 = vld [vmem:[%s323 + $0x30] sm:$0xff]
    %v331 = vld [vmem:[%s323 + $0x38] sm:$0xff]
    %v332 = vld [vmem:[%s323 + $0x40] sm:$0xff]
    %v333 = vld [vmem:[%s323 + $0x48] sm:$0xff]
    %v334 = vld [vmem:[%s323 + $0x50] sm:$0xff]
    %v335 = vld [vmem:[%s323 + $0x58] sm:$0xff]
    %v336 = vld [vmem:[%s323 + $0x60] sm:$0xff]
    %v337 = vld [vmem:[%s323 + $0x68] sm:$0xff]
    %v338 = vld [vmem:[%s323 + $0x70] sm:$0xff]
    %v339 = vld [vmem:[%s323 + $0x78] sm:$0xff]
    %340 = vmatprep.subr.mxu0 0.0
    %341 = vmatpush1.msra.mxu0 %v339
    %342 = vmatprep.subr.mxu0 0.0
    %343 = vmatpush1.msra.mxu0 %v338
    %344 = vmatprep.subr.mxu0 0.0
    %345 = vmatpush1.msra.mxu0 %v337
    %346 = vmatprep.subr.mxu0 0.0
    %347 = vmatpush1.msra.mxu0 %v336
    %348 = vmatprep.subr.mxu0 0.0
    %349 = vmatpush1.msra.mxu0 %v335
    %350 = vmatprep.subr.mxu0 0.0
    %351 = vmatpush1.msra.mxu0 %v334
    %352 = vmatprep.subr.mxu0 0.0
    %353 = vmatpush1.msra.mxu0 %v333
    %354 = vmatprep.subr.mxu0 0.0
    %355 = vmatpush1.msra.mxu0 %v332
    %356 = vmatprep.subr.mxu0 0.0
    %357 = vmatpush1.msra.mxu0 %v331
    %358 = vmatprep.subr.mxu0 0.0
    %359 = vmatpush1.msra.mxu0 %v330
    %360 = vmatprep.subr.mxu0 0.0
    %361 = vmatpush1.msra.mxu0 %v329
    %362 = vmatprep.subr.mxu0 0.0
    %363 = vmatpush1.msra.mxu0 %v328
    %364 = vmatprep.subr.mxu0 0.0
    %365 = vmatpush1.msra.mxu0 %v327
    %366 = vmatprep.subr.mxu0 0.0
    %367 = vmatpush1.msra.mxu0 %v326
    %368 = vmatprep.subr.mxu0 0.0
    %369 = vmatpush1.msra.mxu0 %v325
    %370 = vmatprep.subr.mxu0 0.0
    %371 = vmatpush1.msra.mxu0 %v324
    %372 = vmatprep.subr.mxu0 0.0
    %373 = vmatpush2.msra.mxu0 0.0
    %374 = vmatprep.subr.mxu0 0.0
    %375 = vmatpush2.msra.mxu0 0.0
    %376 = vmatprep.subr.mxu0 0.0
    %377 = vmatpush2.msra.mxu0 0.0
    %378 = vmatprep.subr.mxu0 0.0
    %379 = vmatpush2.msra.mxu0 0.0
    %380 = vmatprep.subr.mxu0 0.0
    %381 = vmatpush2.msra.mxu0 0.0
    %382 = vmatprep.subr.mxu0 0.0
    %383 = vmatpush2.msra.mxu0 0.0
    %384 = vmatprep.subr.mxu0 0.0
    %385 = vmatpush2.msra.mxu0 0.0
    %386 = vmatprep.subr.mxu0 0.0
    %387 = vmatpush2.msra.mxu0 0.0
    %388 = vmatprep.subr.mxu0 0.0
    %389 = vmatpush2.msra.mxu0 0.0
    %390 = vmatprep.subr.mxu0 0.0
    %391 = vmatpush2.msra.mxu0 0.0
    %392 = vmatprep.subr.mxu0 0.0
    %393 = vmatpush2.msra.mxu0 0.0
    %394 = vmatprep.subr.mxu0 0.0
    %395 = vmatpush2.msra.mxu0 0.0
    %396 = vmatprep.subr.mxu0 0.0
    %397 = vmatpush2.msra.mxu0 0.0
    %398 = vmatprep.subr.mxu0 0.0
    %399 = vmatpush2.msra.mxu0 0.0
    %400 = vmatprep.subr.mxu0 0.0
    %401 = vmatpush2.msra.mxu0 0.0
    %402 = vmatprep.subr.mxu0 0.0
    %403 = vmatpush2.msra.mxu0 0.0
    %404 = vmatprep.mubr.f32.mxu0 0.0
    %405 = vmatmul.mubr.f32.gmra.mxu0 %v321
    %v406 = vpop.f32.mrf.mxu0
    %v407 = vadd.f32 0.0, %v406
    %v408 = vpop.f32.mrf.mxu0
    %409 = vmatprep.mubr.f32.mxu0 0.0
    %410 = vmatmul.mubr.f32.gmra.mxu0 %v322
    %v411 = vpop.f32.mrf.mxu0
    %v412 = vadd.f32 0.0, %v411
    %v413 = vpop.f32.mrf.mxu0
    %414 = vdwg.mxu0
    %415 = vst [vmem:[#allocation7] sm:$0xff] %v407
    %416 = vst [vmem:[#allocation7 + $0x8] sm:$0xff] %v412
    // Predicated region
    $region18: #{tpu_custom_call.1} parent=1 // pred_check
      _
    $region19: #{tpu_custom_call.1} parent=1 // pred_check_branch
      %418 = sbr.rel (0) target = $region21
    $region20: #{tpu_custom_call.1} parent=1 // pred_region
      %s420 = ssub.s32 256, 256
      %421 = vsyncadd [#allocation4], %s420
      %s422 = sshll.u32 [#allocation7], 4
      %s423 = int_to_ptr.vmem [resolvable:$true] %s422
      %428 = dma.vmem_to_hbm [thread:$0]  %s423, 256, %s2, [#allocation4], 128, 128, 8
    $region21: #{tpu_custom_call.1} parent=1 // pred_fallthru
      _
    // Predicated region
    $region22: #{tpu_custom_call.1} parent=1 // pred_check
      _
    $region23: #{tpu_custom_call.1} parent=1 // pred_check_branch
      %430 = sbr.rel (0) target = $region25
    $region24: #{tpu_custom_call.1} parent=1 // pred_region
      %431 = dma.done [#allocation4], 256
    $region25: #{tpu_custom_call.1} parent=1 // pred_fallthru
      _
    %432 = vsyncpa [#allocation3], 1
    %433 = vsyncpa [#allocation6], 1
    %434 = vsyncpa [#allocation4], 1

</llo_original>
